<compile_context>
chip_gen: v5e
topology: v5e:2x2
jax: 0.10.0
libtpu: 0.0.40
codegen_flags: <defaults>
</compile_context>

<pallas_src>
import jax
import jax.numpy as jnp
from jax.experimental import pallas as pl
from jax.experimental.pallas import tpu as pltpu

# ----- hyper-parameters (small, consistent with the module) -----------------
E = 32            # output_dim == hidden_dim
FF = 64           # dim_feedforward
TS_DIM = 16       # ts_dim
NHEAD = 4         # divides E (only affects the unused Q/K path, see notes)
NUM_LAYERS = 2
NB = 2 * NUM_LAYERS   # cross-attn blocks: [ts2txt_0, txt2ts_0, ts2txt_1, txt2ts_1]
B = 8             # batch
LN_EPS = 1e-5

# ----- packed-slab layout (single [TOTAL_ROWS, 128] f32 slab) ---------------
# Per block b, rows b*BLK_ROWS + ...
ATTN_R = 0            # rows  0: 32, lanes 0:E   -> folded Wv@Wo           [E, E]
W1_R = 32             # rows 32: 64, lanes 0:FF  -> FFN first linear       [E, FF]
W2_R = 64             # rows 64:128, lanes 0:E   -> FFN second linear      [FF, E]
VEC_R = 128           # rows 128:135 -> b_attn, ln1g, ln1b, ln2g, ln2b, b1, b2
BLK_ROWS = 136        # per-block stride (multiple of 8)
MISC_R = NB * BLK_ROWS          # 544: pe, outg, outb, outbias rows
OUTW_R = MISC_R + 8             # 552: output Linear weight [E, TS_DIM]
TOTAL_ROWS = OUTW_R + E         # 584 (multiple of 8)


# ----------------------------- LayerNorm helpers -----------------------------
def _ln_fast(x, g, b):
    """Single-pass LayerNorm: two independent lane reductions, var=E[x^2]-mu^2."""
    inv_n = 1.0 / x.shape[-1]
    s1 = jnp.sum(x, axis=-1, keepdims=True)
    s2 = jnp.sum(x * x, axis=-1, keepdims=True)
    mu = s1 * inv_n
    var = s2 * inv_n - mu * mu
    return (x - mu) * jax.lax.rsqrt(var + LN_EPS) * g + b


def _ln_ref(x, g, b):
    """Two-pass (torch-style) LayerNorm, used only by the pure-JAX reference."""
    mu = jnp.mean(x, axis=-1, keepdims=True)
    var = jnp.mean((x - mu) ** 2, axis=-1, keepdims=True)
    return (x - mu) / jnp.sqrt(var + LN_EPS) * g + b


# ----------------------------- Pallas kernel --------------------------------
def _decoder_kernel(x_ref, p_ref, o_ref):
    # x_ref: [2B, E]  rows 0:B = ts_emb, rows B:2B = txt_emb
    # p_ref: [TOTAL_ROWS, 128] packed parameter slab (lane-aligned)
    pe = p_ref[MISC_R:MISC_R + 1, 0:E]                 # [1, E], pos-enc at pos 0
    x = x_ref[...] + pe                                # one fused add for both streams
    tgt = x[0:B]                                       # [B, E]
    mem = x[B:2 * B]                                   # [B, E]

    def vec(b, k, width=E):
        r = b * BLK_ROWS + VEC_R + k
        return p_ref[r:r + 1, 0:width]                 # [1, width], lane offset 0

    def cross_block(xq, m, b):
        r0 = b * BLK_ROWS
        # folded cross-attention (softmax over one key == 1):
        #   attn = m @ (Wv Wo) + (bv Wo + bo)
        attn = (jnp.dot(m, p_ref[r0 + ATTN_R:r0 + ATTN_R + E, 0:E],
                        preferred_element_type=jnp.float32)
                + vec(b, 0))
        xq = _ln_fast(xq + attn, vec(b, 1), vec(b, 2))
        # feed-forward
        h = (jnp.dot(xq, p_ref[r0 + W1_R:r0 + W1_R + E, 0:FF],
                     preferred_element_type=jnp.float32)
             + vec(b, 5, FF))
        # TODO(synk): CrossAttnBlock source not provided; GELU FFN assumed
        # (jax.nn.gelu tanh approximation, matched by the reference below).
        h = jax.nn.gelu(h)
        ff = (jnp.dot(h, p_ref[r0 + W2_R:r0 + W2_R + FF, 0:E],
                      preferred_element_type=jnp.float32)
              + vec(b, 6))
        return _ln_fast(xq + ff, vec(b, 3), vec(b, 4))

    for l in range(NUM_LAYERS):
        tgt = cross_block(tgt, mem, 2 * l)      # ts2txt
        mem = cross_block(mem, tgt, 2 * l + 1)  # txt2ts

    # self.out = LayerNorm + Linear
    h = _ln_fast(tgt,
                 p_ref[MISC_R + 1:MISC_R + 2, 0:E],
                 p_ref[MISC_R + 2:MISC_R + 3, 0:E])
    o_ref[...] = (jnp.dot(h, p_ref[OUTW_R:OUTW_R + E, 0:TS_DIM],
                          preferred_element_type=jnp.float32)
                  + p_ref[MISC_R + 3:MISC_R + 4, 0:TS_DIM])


# --------------------- host-side parameter packing ---------------------------
def pack_params(p):
    """Fold Wv/Wo and pack everything into ONE lane-aligned f32 slab (done once)."""
    w_attn = jnp.einsum('bij,bjk->bik', p["wv"], p["wo"])                # [NB,E,E]
    b_attn = jnp.einsum('bj,bjk->bk', p["bv"], p["wo"]) + p["bo"]        # [NB,E]

    slab = jnp.zeros((TOTAL_ROWS, 128), jnp.float32)
    for b in range(NB):
        r0 = b * BLK_ROWS
        slab = slab.at[r0 + ATTN_R:r0 + ATTN_R + E, 0:E].set(w_attn[b])
        slab = slab.at[r0 + W1_R:r0 + W1_R + E, 0:FF].set(p["w1"][b])
        slab = slab.at[r0 + W2_R:r0 + W2_R + FF, 0:E].set(p["w2"][b])
        vr = r0 + VEC_R
        slab = slab.at[vr + 0, 0:E].set(b_attn[b])
        slab = slab.at[vr + 1, 0:E].set(p["ln1g"][b])
        slab = slab.at[vr + 2, 0:E].set(p["ln1b"][b])
        slab = slab.at[vr + 3, 0:E].set(p["ln2g"][b])
        slab = slab.at[vr + 4, 0:E].set(p["ln2b"][b])
        slab = slab.at[vr + 5, 0:FF].set(p["b1"][b])
        slab = slab.at[vr + 6, 0:E].set(p["b2"][b])
    pe = jnp.where(jnp.arange(E) % 2 == 0, 0.0, 1.0).astype(jnp.float32)
    slab = slab.at[MISC_R + 0, 0:E].set(pe)
    slab = slab.at[MISC_R + 1, 0:E].set(p["outg"][0])
    slab = slab.at[MISC_R + 2, 0:E].set(p["outb"][0])
    slab = slab.at[MISC_R + 3, 0:TS_DIM].set(p["outbias"][0])
    slab = slab.at[OUTW_R:OUTW_R + E, 0:TS_DIM].set(p["outw"])
    return slab


# ------------------------------- wrapper -------------------------------------
# 9 serial matmuls: 4 blocks * (8x32x32 + 8x32x64 + 8x64x32) + 8x32x16
_FLOPS = 2 * (NB * (B * E * E + B * E * FF + B * FF * E) + B * E * TS_DIM)
_TRANS = NB * B * FF + 9 * B            # gelu tanh + LN rsqrt
_BYTES = 2 * B * E * 4 + TOTAL_ROWS * 128 * 4 + B * TS_DIM * 4


def bi_cross_attn_decoder(ts_emb, txt_emb, slab):
    """ts_emb, txt_emb: [B, E] float32.  slab = pack_params(p).  Returns [B, TS_DIM]."""
    x = jnp.concatenate([ts_emb, txt_emb], axis=0)     # [2B, E] -> one input DMA
    return pl.pallas_call(
        _decoder_kernel,
        out_shape=jax.ShapeDtypeStruct((B, TS_DIM), jnp.float32),
        in_specs=[pl.BlockSpec(memory_space=pltpu.MemorySpace.VMEM),
                  pl.BlockSpec(memory_space=pltpu.MemorySpace.VMEM)],
        out_specs=pl.BlockSpec(memory_space=pltpu.MemorySpace.VMEM),
        cost_estimate=pl.CostEstimate(flops=_FLOPS, transcendentals=_TRANS,
                                      bytes_accessed=_BYTES),
    )(x, slab)


# --------------------------- pure-JAX reference ------------------------------
def _reference(ts, txt, p):
    pe = jnp.where(jnp.arange(E) % 2 == 0, 0.0, 1.0)[None, :]
    tgt, mem = ts + pe, txt + pe

    def block(x, m, i):
        v = m @ p["wv"][i] + p["bv"][i]
        attn = v @ p["wo"][i] + p["bo"][i]
        x = _ln_ref(x + attn, p["ln1g"][i], p["ln1b"][i])
        ff = jax.nn.gelu(x @ p["w1"][i] + p["b1"][i]) @ p["w2"][i] + p["b2"][i]
        return _ln_ref(x + ff, p["ln2g"][i], p["ln2b"][i])

    for l in range(NUM_LAYERS):
        tgt = block(tgt, mem, 2 * l)
        mem = block(mem, tgt, 2 * l + 1)
    h = _ln_ref(tgt, p["outg"][0], p["outb"][0])
    return h @ p["outw"] + p["outbias"][0]


# ------------------------ deterministic parameters ---------------------------
def _init_params(key):
    ks = jax.random.split(key, 8)
    n = lambda k, shape, scale=0.05: (scale * jax.random.normal(k, shape)).astype(jnp.float32)
    return {
        "wv": n(ks[0], (NB, E, E)),  "bv": n(ks[5], (NB, E), 0.02),
        "wo": n(ks[1], (NB, E, E)),  "bo": n(ks[6], (NB, E), 0.02),
        "ln1g": jnp.ones((NB, E), jnp.float32), "ln1b": jnp.zeros((NB, E), jnp.float32),
        "ln2g": jnp.ones((NB, E), jnp.float32), "ln2b": jnp.zeros((NB, E), jnp.float32),
        "w1": n(ks[2], (NB, E, FF)), "b1": jnp.zeros((NB, FF), jnp.float32),
        "w2": n(ks[3], (NB, FF, E)), "b2": jnp.zeros((NB, E), jnp.float32),
        "outg": jnp.ones((1, E), jnp.float32), "outb": jnp.zeros((1, E), jnp.float32),
        "outw": n(ks[4], (E, TS_DIM)), "outbias": n(ks[7], (1, TS_DIM), 0.02),
    }


if __name__ == "__main__":
    key = jax.random.PRNGKey(0)
    k_ts, k_txt, k_p = jax.random.split(key, 3)
    ts_emb = jax.random.normal(k_ts, (B, E), dtype=jnp.float32)
    txt_emb = jax.random.normal(k_txt, (B, E), dtype=jnp.float32)
    params = _init_params(k_p)

    slab = jax.block_until_ready(pack_params(params))  # packed once, reused per call

    out = bi_cross_attn_decoder(ts_emb, txt_emb, slab)
    out = jax.block_until_ready(out)

    ref = _reference(ts_emb, txt_emb, params)
    assert out.shape == (B, TS_DIM)
    assert jnp.allclose(out, ref, atol=1e-4, rtol=1e-4), "mismatch vs JAX reference"
    print("KERNEL_OK")
</pallas_src>

<mosaic_0001>
module attributes {stable_mosaic.version = 11 : i64} {
  func.func @_decoder_kernel(%arg0: memref<16x32xf32, #tpu.memory_space<vmem>>, %arg1: memref<584x128xf32, #tpu.memory_space<vmem>>, %arg2: memref<8x16xf32, #tpu.memory_space<vmem>>) attributes {dimension_semantics = [], scalar_prefetch = 0 : i64, scratch_operands = 0 : i64, tpu.core_type = #tpu.core_type<tc>} {
    %c544 = arith.constant 544 : index
    %c0 = arith.constant 0 : index
    %0 = vector.load %arg1[%c544, %c0] : memref<584x128xf32, #tpu.memory_space<vmem>>, vector<1x32xf32>
    %c0_0 = arith.constant 0 : index
    %c0_1 = arith.constant 0 : index
    %1 = vector.load %arg0[%c0_0, %c0_1] : memref<16x32xf32, #tpu.memory_space<vmem>>, vector<16x32xf32>
    %2 = vector.broadcast %0 : vector<1x32xf32> to vector<16x32xf32>
    %3 = arith.addf %1, %2 : vector<16x32xf32>
    %4 = vector.extract_strided_slice %3 {offsets = [0, 0], sizes = [8, 32], strides = [1, 1]} : vector<16x32xf32> to vector<8x32xf32>
    %5 = vector.extract_strided_slice %3 {offsets = [8, 0], sizes = [8, 32], strides = [1, 1]} : vector<16x32xf32> to vector<8x32xf32>
    %c0_2 = arith.constant 0 : index
    %c0_3 = arith.constant 0 : index
    %6 = vector.load %arg1[%c0_2, %c0_3] : memref<584x128xf32, #tpu.memory_space<vmem>>, vector<32x32xf32>
    %cst = arith.constant dense<0.000000e+00> : vector<8x32xf32>
    %7 = tpu.matmul %5, %6, %cst {dimension_numbers = #tpu.dot_dimension_numbers<[1], [0], [0], [1], [0, 0, 1, 1], [], []>} : vector<8x32xf32>, vector<32x32xf32>, vector<8x32xf32> -> vector<8x32xf32>
    %c128 = arith.constant 128 : index
    %c0_4 = arith.constant 0 : index
    %8 = vector.load %arg1[%c128, %c0_4] : memref<584x128xf32, #tpu.memory_space<vmem>>, vector<1x32xf32>
    %9 = vector.broadcast %8 : vector<1x32xf32> to vector<8x32xf32>
    %10 = arith.addf %7, %9 : vector<8x32xf32>
    %11 = arith.addf %4, %10 : vector<8x32xf32>
    %c129 = arith.constant 129 : index
    %c0_5 = arith.constant 0 : index
    %12 = vector.load %arg1[%c129, %c0_5] : memref<584x128xf32, #tpu.memory_space<vmem>>, vector<1x32xf32>
    %c130 = arith.constant 130 : index
    %c0_6 = arith.constant 0 : index
    %13 = vector.load %arg1[%c130, %c0_6] : memref<584x128xf32, #tpu.memory_space<vmem>>, vector<1x32xf32>
    %cst_7 = arith.constant dense<0.000000e+00> : vector<8xf32>
    %14 = vector.multi_reduction <add>, %11, %cst_7 [1] : vector<8x32xf32> to vector<8xf32>
    %15 = vector.shape_cast %14 : vector<8xf32> to vector<8x1xf32>
    %16 = arith.mulf %11, %11 : vector<8x32xf32>
    %cst_8 = arith.constant dense<0.000000e+00> : vector<8xf32>
    %17 = vector.multi_reduction <add>, %16, %cst_8 [1] : vector<8x32xf32> to vector<8xf32>
    %18 = vector.shape_cast %17 : vector<8xf32> to vector<8x1xf32>
    %cst_9 = arith.constant 3.125000e-02 : f32
    %19 = vector.broadcast %cst_9 : f32 to vector<8x1xf32>
    %20 = arith.mulf %15, %19 : vector<8x1xf32>
    %cst_10 = arith.constant 3.125000e-02 : f32
    %21 = vector.broadcast %cst_10 : f32 to vector<8x1xf32>
    %22 = arith.mulf %18, %21 : vector<8x1xf32>
    %23 = arith.mulf %20, %20 : vector<8x1xf32>
    %24 = arith.subf %22, %23 : vector<8x1xf32>
    %25 = vector.broadcast %20 : vector<8x1xf32> to vector<8x32xf32>
    %26 = arith.subf %11, %25 : vector<8x32xf32>
    %cst_11 = arith.constant 9.99999974E-6 : f32
    %27 = vector.broadcast %cst_11 : f32 to vector<8x1xf32>
    %28 = arith.addf %24, %27 : vector<8x1xf32>
    %29 = math.rsqrt %28 : vector<8x1xf32>
    %30 = vector.broadcast %29 : vector<8x1xf32> to vector<8x32xf32>
    %31 = arith.mulf %26, %30 : vector<8x32xf32>
    %32 = vector.broadcast %12 : vector<1x32xf32> to vector<8x32xf32>
    %33 = arith.mulf %31, %32 : vector<8x32xf32>
    %34 = vector.broadcast %13 : vector<1x32xf32> to vector<8x32xf32>
    %35 = arith.addf %33, %34 : vector<8x32xf32>
    %c32 = arith.constant 32 : index
    %c0_12 = arith.constant 0 : index
    %36 = vector.load %arg1[%c32, %c0_12] : memref<584x128xf32, #tpu.memory_space<vmem>>, vector<32x64xf32>
    %cst_13 = arith.constant dense<0.000000e+00> : vector<8x64xf32>
    %37 = tpu.matmul %35, %36, %cst_13 {dimension_numbers = #tpu.dot_dimension_numbers<[1], [0], [0], [1], [0, 0, 1, 1], [], []>} : vector<8x32xf32>, vector<32x64xf32>, vector<8x64xf32> -> vector<8x64xf32>
    %c133 = arith.constant 133 : index
    %c0_14 = arith.constant 0 : index
    %38 = vector.load %arg1[%c133, %c0_14] : memref<584x128xf32, #tpu.memory_space<vmem>>, vector<1x64xf32>
    %39 = vector.broadcast %38 : vector<1x64xf32> to vector<8x64xf32>
    %40 = arith.addf %37, %39 : vector<8x64xf32>
    %41 = arith.mulf %40, %40 : vector<8x64xf32>
    %42 = arith.mulf %40, %41 : vector<8x64xf32>
    %cst_15 = arith.constant 4.471500e-02 : f32
    %43 = vector.broadcast %cst_15 : f32 to vector<8x64xf32>
    %44 = arith.mulf %43, %42 : vector<8x64xf32>
    %45 = arith.addf %40, %44 : vector<8x64xf32>
    %cst_16 = arith.constant 0.797884583 : f32
    %46 = vector.broadcast %cst_16 : f32 to vector<8x64xf32>
    %47 = arith.mulf %46, %45 : vector<8x64xf32>
    %48 = math.tanh %47 : vector<8x64xf32>
    %cst_17 = arith.constant 1.000000e+00 : f32
    %49 = vector.broadcast %cst_17 : f32 to vector<8x64xf32>
    %50 = arith.addf %49, %48 : vector<8x64xf32>
    %cst_18 = arith.constant 5.000000e-01 : f32
    %51 = vector.broadcast %cst_18 : f32 to vector<8x64xf32>
    %52 = arith.mulf %51, %50 : vector<8x64xf32>
    %53 = arith.mulf %40, %52 : vector<8x64xf32>
    %c64 = arith.constant 64 : index
    %c0_19 = arith.constant 0 : index
    %54 = vector.load %arg1[%c64, %c0_19] : memref<584x128xf32, #tpu.memory_space<vmem>>, vector<64x32xf32>
    %cst_20 = arith.constant dense<0.000000e+00> : vector<8x32xf32>
    %55 = tpu.matmul %53, %54, %cst_20 {dimension_numbers = #tpu.dot_dimension_numbers<[1], [0], [0], [1], [0, 0, 1, 1], [], []>} : vector<8x64xf32>, vector<64x32xf32>, vector<8x32xf32> -> vector<8x32xf32>
    %c134 = arith.constant 134 : index
    %c0_21 = arith.constant 0 : index
    %56 = vector.load %arg1[%c134, %c0_21] : memref<584x128xf32, #tpu.memory_space<vmem>>, vector<1x32xf32>
    %57 = vector.broadcast %56 : vector<1x32xf32> to vector<8x32xf32>
    %58 = arith.addf %55, %57 : vector<8x32xf32>
    %59 = arith.addf %35, %58 : vector<8x32xf32>
    %c131 = arith.constant 131 : index
    %c0_22 = arith.constant 0 : index
    %60 = vector.load %arg1[%c131, %c0_22] : memref<584x128xf32, #tpu.memory_space<vmem>>, vector<1x32xf32>
    %c132 = arith.constant 132 : index
    %c0_23 = arith.constant 0 : index
    %61 = vector.load %arg1[%c132, %c0_23] : memref<584x128xf32, #tpu.memory_space<vmem>>, vector<1x32xf32>
    %cst_24 = arith.constant dense<0.000000e+00> : vector<8xf32>
    %62 = vector.multi_reduction <add>, %59, %cst_24 [1] : vector<8x32xf32> to vector<8xf32>
    %63 = vector.shape_cast %62 : vector<8xf32> to vector<8x1xf32>
    %64 = arith.mulf %59, %59 : vector<8x32xf32>
    %cst_25 = arith.constant dense<0.000000e+00> : vector<8xf32>
    %65 = vector.multi_reduction <add>, %64, %cst_25 [1] : vector<8x32xf32> to vector<8xf32>
    %66 = vector.shape_cast %65 : vector<8xf32> to vector<8x1xf32>
    %cst_26 = arith.constant 3.125000e-02 : f32
    %67 = vector.broadcast %cst_26 : f32 to vector<8x1xf32>
    %68 = arith.mulf %63, %67 : vector<8x1xf32>
    %cst_27 = arith.constant 3.125000e-02 : f32
    %69 = vector.broadcast %cst_27 : f32 to vector<8x1xf32>
    %70 = arith.mulf %66, %69 : vector<8x1xf32>
    %71 = arith.mulf %68, %68 : vector<8x1xf32>
    %72 = arith.subf %70, %71 : vector<8x1xf32>
    %73 = vector.broadcast %68 : vector<8x1xf32> to vector<8x32xf32>
    %74 = arith.subf %59, %73 : vector<8x32xf32>
    %cst_28 = arith.constant 9.99999974E-6 : f32
    %75 = vector.broadcast %cst_28 : f32 to vector<8x1xf32>
    %76 = arith.addf %72, %75 : vector<8x1xf32>
    %77 = math.rsqrt %76 : vector<8x1xf32>
    %78 = vector.broadcast %77 : vector<8x1xf32> to vector<8x32xf32>
    %79 = arith.mulf %74, %78 : vector<8x32xf32>
    %80 = vector.broadcast %60 : vector<1x32xf32> to vector<8x32xf32>
    %81 = arith.mulf %79, %80 : vector<8x32xf32>
    %82 = vector.broadcast %61 : vector<1x32xf32> to vector<8x32xf32>
    %83 = arith.addf %81, %82 : vector<8x32xf32>
    %c136 = arith.constant 136 : index
    %c0_29 = arith.constant 0 : index
    %84 = vector.load %arg1[%c136, %c0_29] : memref<584x128xf32, #tpu.memory_space<vmem>>, vector<32x32xf32>
    %cst_30 = arith.constant dense<0.000000e+00> : vector<8x32xf32>
    %85 = tpu.matmul %83, %84, %cst_30 {dimension_numbers = #tpu.dot_dimension_numbers<[1], [0], [0], [1], [0, 0, 1, 1], [], []>} : vector<8x32xf32>, vector<32x32xf32>, vector<8x32xf32> -> vector<8x32xf32>
    %c264 = arith.constant 264 : index
    %c0_31 = arith.constant 0 : index
    %86 = vector.load %arg1[%c264, %c0_31] : memref<584x128xf32, #tpu.memory_space<vmem>>, vector<1x32xf32>
    %87 = vector.broadcast %86 : vector<1x32xf32> to vector<8x32xf32>
    %88 = arith.addf %85, %87 : vector<8x32xf32>
    %89 = arith.addf %5, %88 : vector<8x32xf32>
    %c265 = arith.constant 265 : index
    %c0_32 = arith.constant 0 : index
    %90 = vector.load %arg1[%c265, %c0_32] : memref<584x128xf32, #tpu.memory_space<vmem>>, vector<1x32xf32>
    %c266 = arith.constant 266 : index
    %c0_33 = arith.constant 0 : index
    %91 = vector.load %arg1[%c266, %c0_33] : memref<584x128xf32, #tpu.memory_space<vmem>>, vector<1x32xf32>
    %cst_34 = arith.constant dense<0.000000e+00> : vector<8xf32>
    %92 = vector.multi_reduction <add>, %89, %cst_34 [1] : vector<8x32xf32> to vector<8xf32>
    %93 = vector.shape_cast %92 : vector<8xf32> to vector<8x1xf32>
    %94 = arith.mulf %89, %89 : vector<8x32xf32>
    %cst_35 = arith.constant dense<0.000000e+00> : vector<8xf32>
    %95 = vector.multi_reduction <add>, %94, %cst_35 [1] : vector<8x32xf32> to vector<8xf32>
    %96 = vector.shape_cast %95 : vector<8xf32> to vector<8x1xf32>
    %cst_36 = arith.constant 3.125000e-02 : f32
    %97 = vector.broadcast %cst_36 : f32 to vector<8x1xf32>
    %98 = arith.mulf %93, %97 : vector<8x1xf32>
    %cst_37 = arith.constant 3.125000e-02 : f32
    %99 = vector.broadcast %cst_37 : f32 to vector<8x1xf32>
    %100 = arith.mulf %96, %99 : vector<8x1xf32>
    %101 = arith.mulf %98, %98 : vector<8x1xf32>
    %102 = arith.subf %100, %101 : vector<8x1xf32>
    %103 = vector.broadcast %98 : vector<8x1xf32> to vector<8x32xf32>
    %104 = arith.subf %89, %103 : vector<8x32xf32>
    %cst_38 = arith.constant 9.99999974E-6 : f32
    %105 = vector.broadcast %cst_38 : f32 to vector<8x1xf32>
    %106 = arith.addf %102, %105 : vector<8x1xf32>
    %107 = math.rsqrt %106 : vector<8x1xf32>
    %108 = vector.broadcast %107 : vector<8x1xf32> to vector<8x32xf32>
    %109 = arith.mulf %104, %108 : vector<8x32xf32>
    %110 = vector.broadcast %90 : vector<1x32xf32> to vector<8x32xf32>
    %111 = arith.mulf %109, %110 : vector<8x32xf32>
    %112 = vector.broadcast %91 : vector<1x32xf32> to vector<8x32xf32>
    %113 = arith.addf %111, %112 : vector<8x32xf32>
    %c168 = arith.constant 168 : index
    %c0_39 = arith.constant 0 : index
    %114 = vector.load %arg1[%c168, %c0_39] : memref<584x128xf32, #tpu.memory_space<vmem>>, vector<32x64xf32>
    %cst_40 = arith.constant dense<0.000000e+00> : vector<8x64xf32>
    %115 = tpu.matmul %113, %114, %cst_40 {dimension_numbers = #tpu.dot_dimension_numbers<[1], [0], [0], [1], [0, 0, 1, 1], [], []>} : vector<8x32xf32>, vector<32x64xf32>, vector<8x64xf32> -> vector<8x64xf32>
    %c269 = arith.constant 269 : index
    %c0_41 = arith.constant 0 : index
    %116 = vector.load %arg1[%c269, %c0_41] : memref<584x128xf32, #tpu.memory_space<vmem>>, vector<1x64xf32>
    %117 = vector.broadcast %116 : vector<1x64xf32> to vector<8x64xf32>
    %118 = arith.addf %115, %117 : vector<8x64xf32>
    %119 = arith.mulf %118, %118 : vector<8x64xf32>
    %120 = arith.mulf %118, %119 : vector<8x64xf32>
    %cst_42 = arith.constant 4.471500e-02 : f32
    %121 = vector.broadcast %cst_42 : f32 to vector<8x64xf32>
    %122 = arith.mulf %121, %120 : vector<8x64xf32>
    %123 = arith.addf %118, %122 : vector<8x64xf32>
    %cst_43 = arith.constant 0.797884583 : f32
    %124 = vector.broadcast %cst_43 : f32 to vector<8x64xf32>
    %125 = arith.mulf %124, %123 : vector<8x64xf32>
    %126 = math.tanh %125 : vector<8x64xf32>
    %cst_44 = arith.constant 1.000000e+00 : f32
    %127 = vector.broadcast %cst_44 : f32 to vector<8x64xf32>
    %128 = arith.addf %127, %126 : vector<8x64xf32>
    %cst_45 = arith.constant 5.000000e-01 : f32
    %129 = vector.broadcast %cst_45 : f32 to vector<8x64xf32>
    %130 = arith.mulf %129, %128 : vector<8x64xf32>
    %131 = arith.mulf %118, %130 : vector<8x64xf32>
    %c200 = arith.constant 200 : index
    %c0_46 = arith.constant 0 : index
    %132 = vector.load %arg1[%c200, %c0_46] : memref<584x128xf32, #tpu.memory_space<vmem>>, vector<64x32xf32>
    %cst_47 = arith.constant dense<0.000000e+00> : vector<8x32xf32>
    %133 = tpu.matmul %131, %132, %cst_47 {dimension_numbers = #tpu.dot_dimension_numbers<[1], [0], [0], [1], [0, 0, 1, 1], [], []>} : vector<8x64xf32>, vector<64x32xf32>, vector<8x32xf32> -> vector<8x32xf32>
    %c270 = arith.constant 270 : index
    %c0_48 = arith.constant 0 : index
    %134 = vector.load %arg1[%c270, %c0_48] : memref<584x128xf32, #tpu.memory_space<vmem>>, vector<1x32xf32>
    %135 = vector.broadcast %134 : vector<1x32xf32> to vector<8x32xf32>
    %136 = arith.addf %133, %135 : vector<8x32xf32>
    %137 = arith.addf %113, %136 : vector<8x32xf32>
    %c267 = arith.constant 267 : index
    %c0_49 = arith.constant 0 : index
    %138 = vector.load %arg1[%c267, %c0_49] : memref<584x128xf32, #tpu.memory_space<vmem>>, vector<1x32xf32>
    %c268 = arith.constant 268 : index
    %c0_50 = arith.constant 0 : index
    %139 = vector.load %arg1[%c268, %c0_50] : memref<584x128xf32, #tpu.memory_space<vmem>>, vector<1x32xf32>
    %cst_51 = arith.constant dense<0.000000e+00> : vector<8xf32>
    %140 = vector.multi_reduction <add>, %137, %cst_51 [1] : vector<8x32xf32> to vector<8xf32>
    %141 = vector.shape_cast %140 : vector<8xf32> to vector<8x1xf32>
    %142 = arith.mulf %137, %137 : vector<8x32xf32>
    %cst_52 = arith.constant dense<0.000000e+00> : vector<8xf32>
    %143 = vector.multi_reduction <add>, %142, %cst_52 [1] : vector<8x32xf32> to vector<8xf32>
    %144 = vector.shape_cast %143 : vector<8xf32> to vector<8x1xf32>
    %cst_53 = arith.constant 3.125000e-02 : f32
    %145 = vector.broadcast %cst_53 : f32 to vector<8x1xf32>
    %146 = arith.mulf %141, %145 : vector<8x1xf32>
    %cst_54 = arith.constant 3.125000e-02 : f32
    %147 = vector.broadcast %cst_54 : f32 to vector<8x1xf32>
    %148 = arith.mulf %144, %147 : vector<8x1xf32>
    %149 = arith.mulf %146, %146 : vector<8x1xf32>
    %150 = arith.subf %148, %149 : vector<8x1xf32>
    %151 = vector.broadcast %146 : vector<8x1xf32> to vector<8x32xf32>
    %152 = arith.subf %137, %151 : vector<8x32xf32>
    %cst_55 = arith.constant 9.99999974E-6 : f32
    %153 = vector.broadcast %cst_55 : f32 to vector<8x1xf32>
    %154 = arith.addf %150, %153 : vector<8x1xf32>
    %155 = math.rsqrt %154 : vector<8x1xf32>
    %156 = vector.broadcast %155 : vector<8x1xf32> to vector<8x32xf32>
    %157 = arith.mulf %152, %156 : vector<8x32xf32>
    %158 = vector.broadcast %138 : vector<1x32xf32> to vector<8x32xf32>
    %159 = arith.mulf %157, %158 : vector<8x32xf32>
    %160 = vector.broadcast %139 : vector<1x32xf32> to vector<8x32xf32>
    %161 = arith.addf %159, %160 : vector<8x32xf32>
    %c272 = arith.constant 272 : index
    %c0_56 = arith.constant 0 : index
    %162 = vector.load %arg1[%c272, %c0_56] : memref<584x128xf32, #tpu.memory_space<vmem>>, vector<32x32xf32>
    %cst_57 = arith.constant dense<0.000000e+00> : vector<8x32xf32>
    %163 = tpu.matmul %161, %162, %cst_57 {dimension_numbers = #tpu.dot_dimension_numbers<[1], [0], [0], [1], [0, 0, 1, 1], [], []>} : vector<8x32xf32>, vector<32x32xf32>, vector<8x32xf32> -> vector<8x32xf32>
    %c400 = arith.constant 400 : index
    %c0_58 = arith.constant 0 : index
    %164 = vector.load %arg1[%c400, %c0_58] : memref<584x128xf32, #tpu.memory_space<vmem>>, vector<1x32xf32>
    %165 = vector.broadcast %164 : vector<1x32xf32> to vector<8x32xf32>
    %166 = arith.addf %163, %165 : vector<8x32xf32>
    %167 = arith.addf %83, %166 : vector<8x32xf32>
    %c401 = arith.constant 401 : index
    %c0_59 = arith.constant 0 : index
    %168 = vector.load %arg1[%c401, %c0_59] : memref<584x128xf32, #tpu.memory_space<vmem>>, vector<1x32xf32>
    %c402 = arith.constant 402 : index
    %c0_60 = arith.constant 0 : index
    %169 = vector.load %arg1[%c402, %c0_60] : memref<584x128xf32, #tpu.memory_space<vmem>>, vector<1x32xf32>
    %cst_61 = arith.constant dense<0.000000e+00> : vector<8xf32>
    %170 = vector.multi_reduction <add>, %167, %cst_61 [1] : vector<8x32xf32> to vector<8xf32>
    %171 = vector.shape_cast %170 : vector<8xf32> to vector<8x1xf32>
    %172 = arith.mulf %167, %167 : vector<8x32xf32>
    %cst_62 = arith.constant dense<0.000000e+00> : vector<8xf32>
    %173 = vector.multi_reduction <add>, %172, %cst_62 [1] : vector<8x32xf32> to vector<8xf32>
    %174 = vector.shape_cast %173 : vector<8xf32> to vector<8x1xf32>
    %cst_63 = arith.constant 3.125000e-02 : f32
    %175 = vector.broadcast %cst_63 : f32 to vector<8x1xf32>
    %176 = arith.mulf %171, %175 : vector<8x1xf32>
    %cst_64 = arith.constant 3.125000e-02 : f32
    %177 = vector.broadcast %cst_64 : f32 to vector<8x1xf32>
    %178 = arith.mulf %174, %177 : vector<8x1xf32>
    %179 = arith.mulf %176, %176 : vector<8x1xf32>
    %180 = arith.subf %178, %179 : vector<8x1xf32>
    %181 = vector.broadcast %176 : vector<8x1xf32> to vector<8x32xf32>
    %182 = arith.subf %167, %181 : vector<8x32xf32>
    %cst_65 = arith.constant 9.99999974E-6 : f32
    %183 = vector.broadcast %cst_65 : f32 to vector<8x1xf32>
    %184 = arith.addf %180, %183 : vector<8x1xf32>
    %185 = math.rsqrt %184 : vector<8x1xf32>
    %186 = vector.broadcast %185 : vector<8x1xf32> to vector<8x32xf32>
    %187 = arith.mulf %182, %186 : vector<8x32xf32>
    %188 = vector.broadcast %168 : vector<1x32xf32> to vector<8x32xf32>
    %189 = arith.mulf %187, %188 : vector<8x32xf32>
    %190 = vector.broadcast %169 : vector<1x32xf32> to vector<8x32xf32>
    %191 = arith.addf %189, %190 : vector<8x32xf32>
    %c304 = arith.constant 304 : index
    %c0_66 = arith.constant 0 : index
    %192 = vector.load %arg1[%c304, %c0_66] : memref<584x128xf32, #tpu.memory_space<vmem>>, vector<32x64xf32>
    %cst_67 = arith.constant dense<0.000000e+00> : vector<8x64xf32>
    %193 = tpu.matmul %191, %192, %cst_67 {dimension_numbers = #tpu.dot_dimension_numbers<[1], [0], [0], [1], [0, 0, 1, 1], [], []>} : vector<8x32xf32>, vector<32x64xf32>, vector<8x64xf32> -> vector<8x64xf32>
    %c405 = arith.constant 405 : index
    %c0_68 = arith.constant 0 : index
    %194 = vector.load %arg1[%c405, %c0_68] : memref<584x128xf32, #tpu.memory_space<vmem>>, vector<1x64xf32>
    %195 = vector.broadcast %194 : vector<1x64xf32> to vector<8x64xf32>
    %196 = arith.addf %193, %195 : vector<8x64xf32>
    %197 = arith.mulf %196, %196 : vector<8x64xf32>
    %198 = arith.mulf %196, %197 : vector<8x64xf32>
    %cst_69 = arith.constant 4.471500e-02 : f32
    %199 = vector.broadcast %cst_69 : f32 to vector<8x64xf32>
    %200 = arith.mulf %199, %198 : vector<8x64xf32>
    %201 = arith.addf %196, %200 : vector<8x64xf32>
    %cst_70 = arith.constant 0.797884583 : f32
    %202 = vector.broadcast %cst_70 : f32 to vector<8x64xf32>
    %203 = arith.mulf %202, %201 : vector<8x64xf32>
    %204 = math.tanh %203 : vector<8x64xf32>
    %cst_71 = arith.constant 1.000000e+00 : f32
    %205 = vector.broadcast %cst_71 : f32 to vector<8x64xf32>
    %206 = arith.addf %205, %204 : vector<8x64xf32>
    %cst_72 = arith.constant 5.000000e-01 : f32
    %207 = vector.broadcast %cst_72 : f32 to vector<8x64xf32>
    %208 = arith.mulf %207, %206 : vector<8x64xf32>
    %209 = arith.mulf %196, %208 : vector<8x64xf32>
    %c336 = arith.constant 336 : index
    %c0_73 = arith.constant 0 : index
    %210 = vector.load %arg1[%c336, %c0_73] : memref<584x128xf32, #tpu.memory_space<vmem>>, vector<64x32xf32>
    %cst_74 = arith.constant dense<0.000000e+00> : vector<8x32xf32>
    %211 = tpu.matmul %209, %210, %cst_74 {dimension_numbers = #tpu.dot_dimension_numbers<[1], [0], [0], [1], [0, 0, 1, 1], [], []>} : vector<8x64xf32>, vector<64x32xf32>, vector<8x32xf32> -> vector<8x32xf32>
    %c406 = arith.constant 406 : index
    %c0_75 = arith.constant 0 : index
    %212 = vector.load %arg1[%c406, %c0_75] : memref<584x128xf32, #tpu.memory_space<vmem>>, vector<1x32xf32>
    %213 = vector.broadcast %212 : vector<1x32xf32> to vector<8x32xf32>
    %214 = arith.addf %211, %213 : vector<8x32xf32>
    %215 = arith.addf %191, %214 : vector<8x32xf32>
    %c403 = arith.constant 403 : index
    %c0_76 = arith.constant 0 : index
    %216 = vector.load %arg1[%c403, %c0_76] : memref<584x128xf32, #tpu.memory_space<vmem>>, vector<1x32xf32>
    %c404 = arith.constant 404 : index
    %c0_77 = arith.constant 0 : index
    %217 = vector.load %arg1[%c404, %c0_77] : memref<584x128xf32, #tpu.memory_space<vmem>>, vector<1x32xf32>
    %cst_78 = arith.constant dense<0.000000e+00> : vector<8xf32>
    %218 = vector.multi_reduction <add>, %215, %cst_78 [1] : vector<8x32xf32> to vector<8xf32>
    %219 = vector.shape_cast %218 : vector<8xf32> to vector<8x1xf32>
    %220 = arith.mulf %215, %215 : vector<8x32xf32>
    %cst_79 = arith.constant dense<0.000000e+00> : vector<8xf32>
    %221 = vector.multi_reduction <add>, %220, %cst_79 [1] : vector<8x32xf32> to vector<8xf32>
    %222 = vector.shape_cast %221 : vector<8xf32> to vector<8x1xf32>
    %cst_80 = arith.constant 3.125000e-02 : f32
    %223 = vector.broadcast %cst_80 : f32 to vector<8x1xf32>
    %224 = arith.mulf %219, %223 : vector<8x1xf32>
    %cst_81 = arith.constant 3.125000e-02 : f32
    %225 = vector.broadcast %cst_81 : f32 to vector<8x1xf32>
    %226 = arith.mulf %222, %225 : vector<8x1xf32>
    %227 = arith.mulf %224, %224 : vector<8x1xf32>
    %228 = arith.subf %226, %227 : vector<8x1xf32>
    %229 = vector.broadcast %224 : vector<8x1xf32> to vector<8x32xf32>
    %230 = arith.subf %215, %229 : vector<8x32xf32>
    %cst_82 = arith.constant 9.99999974E-6 : f32
    %231 = vector.broadcast %cst_82 : f32 to vector<8x1xf32>
    %232 = arith.addf %228, %231 : vector<8x1xf32>
    %233 = math.rsqrt %232 : vector<8x1xf32>
    %234 = vector.broadcast %233 : vector<8x1xf32> to vector<8x32xf32>
    %235 = arith.mulf %230, %234 : vector<8x32xf32>
    %236 = vector.broadcast %216 : vector<1x32xf32> to vector<8x32xf32>
    %237 = arith.mulf %235, %236 : vector<8x32xf32>
    %238 = vector.broadcast %217 : vector<1x32xf32> to vector<8x32xf32>
    %239 = arith.addf %237, %238 : vector<8x32xf32>
    %c545 = arith.constant 545 : index
    %c0_83 = arith.constant 0 : index
    %240 = vector.load %arg1[%c545, %c0_83] : memref<584x128xf32, #tpu.memory_space<vmem>>, vector<1x32xf32>
    %c546 = arith.constant 546 : index
    %c0_84 = arith.constant 0 : index
    %241 = vector.load %arg1[%c546, %c0_84] : memref<584x128xf32, #tpu.memory_space<vmem>>, vector<1x32xf32>
    %cst_85 = arith.constant dense<0.000000e+00> : vector<8xf32>
    %242 = vector.multi_reduction <add>, %239, %cst_85 [1] : vector<8x32xf32> to vector<8xf32>
    %243 = vector.shape_cast %242 : vector<8xf32> to vector<8x1xf32>
    %244 = arith.mulf %239, %239 : vector<8x32xf32>
    %cst_86 = arith.constant dense<0.000000e+00> : vector<8xf32>
    %245 = vector.multi_reduction <add>, %244, %cst_86 [1] : vector<8x32xf32> to vector<8xf32>
    %246 = vector.shape_cast %245 : vector<8xf32> to vector<8x1xf32>
    %cst_87 = arith.constant 3.125000e-02 : f32
    %247 = vector.broadcast %cst_87 : f32 to vector<8x1xf32>
    %248 = arith.mulf %243, %247 : vector<8x1xf32>
    %cst_88 = arith.constant 3.125000e-02 : f32
    %249 = vector.broadcast %cst_88 : f32 to vector<8x1xf32>
    %250 = arith.mulf %246, %249 : vector<8x1xf32>
    %251 = arith.mulf %248, %248 : vector<8x1xf32>
    %252 = arith.subf %250, %251 : vector<8x1xf32>
    %253 = vector.broadcast %248 : vector<8x1xf32> to vector<8x32xf32>
    %254 = arith.subf %239, %253 : vector<8x32xf32>
    %cst_89 = arith.constant 9.99999974E-6 : f32
    %255 = vector.broadcast %cst_89 : f32 to vector<8x1xf32>
    %256 = arith.addf %252, %255 : vector<8x1xf32>
    %257 = math.rsqrt %256 : vector<8x1xf32>
    %258 = vector.broadcast %257 : vector<8x1xf32> to vector<8x32xf32>
    %259 = arith.mulf %254, %258 : vector<8x32xf32>
    %260 = vector.broadcast %240 : vector<1x32xf32> to vector<8x32xf32>
    %261 = arith.mulf %259, %260 : vector<8x32xf32>
    %262 = vector.broadcast %241 : vector<1x32xf32> to vector<8x32xf32>
    %263 = arith.addf %261, %262 : vector<8x32xf32>
    %c552 = arith.constant 552 : index
    %c0_90 = arith.constant 0 : index
    %264 = vector.load %arg1[%c552, %c0_90] : memref<584x128xf32, #tpu.memory_space<vmem>>, vector<32x16xf32>
    %cst_91 = arith.constant dense<0.000000e+00> : vector<8x16xf32>
    %265 = tpu.matmul %263, %264, %cst_91 {dimension_numbers = #tpu.dot_dimension_numbers<[1], [0], [0], [1], [0, 0, 1, 1], [], []>} : vector<8x32xf32>, vector<32x16xf32>, vector<8x16xf32> -> vector<8x16xf32>
    %c547 = arith.constant 547 : index
    %c0_92 = arith.constant 0 : index
    %266 = vector.load %arg1[%c547, %c0_92] : memref<584x128xf32, #tpu.memory_space<vmem>>, vector<1x16xf32>
    %267 = vector.broadcast %266 : vector<1x16xf32> to vector<8x16xf32>
    %268 = arith.addf %265, %267 : vector<8x16xf32>
    %c0_93 = arith.constant 0 : index
    %c0_94 = arith.constant 0 : index
    %269 = vector.load %arg2[%c0_93, %c0_94] : memref<8x16xf32, #tpu.memory_space<vmem>>, vector<8x16xf32>
    tpu.vector_store %arg2[%c0_93, %c0_94], %268 {strides = array<i32>} : memref<8x16xf32, #tpu.memory_space<vmem>>, vector<8x16xf32>,
    return
  }
}

</mosaic_0001>

<llo_original>
// kernel: tpu_custom_call.1
$region0: #{tpu_custom_call.1}
  #allocation0 [shape = 'u32[]', space=smem, size = 0x4, offset = 0x4, fixed_abs, tag = 'smem constant byte address 0x4 - core index']
  #allocation1 [shape = 'u32[72,128]{1,0:T(1,128)}', space=vmem, size = 0x9000, scoped, tag = 'internal scratch']
  %s0 = inlined_call_operand.hbm [shape: f32[16,32], index: 0, kind: input, shape index: {}]
  %s1 = inlined_call_operand.hbm [shape: f32[584,128], index: 1, kind: input, shape index: {}]
  %s2 = inlined_call_operand.hbm [shape: f32[8,16], index: 2, kind: output, shape index: {}]
  %s3 = sld [smem:[#allocation0]]
  $region26: #{tpu_custom_call.1} parent=0
    _
  %s5 = ssub.s32 1, %s3
  %s6 = scalar_select 0, %s5, %s3
  $region1: #{tpu_custom_call.1} parent=0
    #allocation2 [shape = 'u8[8192]{0}', space=vmem, size = 0x2000, scoped, tag = 'input window, operand 0, single buffered']
    #allocation3 [shape = 's32[1]{0}', space=sflag, size = 0x4, scoped, tag = 'scoped memory for tpu_custom_call.1']
    #allocation4 [shape = 's32[1]{0}', space=sflag, size = 0x4, scoped, tag = 'scoped memory for tpu_custom_call.1']
    #allocation5 [shape = 'u8[299008]{0}', space=vmem, size = 0x49000, scoped, tag = 'input window, operand 1, single buffered']
    #allocation6 [shape = 's32[1]{0}', space=sflag, size = 0x4, scoped, tag = 'scoped memory for tpu_custom_call.1']
    #allocation7 [shape = 'u8[4096]{0}', space=vmem, size = 0x1000, scoped, tag = 'output window, operand 0, single buffered']
    %7 = vsyncpa [#allocation3], 0
    %8 = vsyncpa [#allocation6], 0
    %9 = vsyncpa [#allocation4], 0
    // Predicated region
    $region2: #{tpu_custom_call.1} parent=1 // pred_check
      _
    $region3: #{tpu_custom_call.1} parent=1 // pred_check_branch
      %11 = sbr.rel (0) target = $region5
    $region4: #{tpu_custom_call.1} parent=1 // pred_region
      %13 = vsyncadd [#allocation3], 0
      %s14 = sshll.u32 %s0, 4
      %s15 = int_to_ptr.hbm [resolvable:$true] %s14
      %s16 = sshll.u32 [#allocation2], 4
      %s17 = int_to_ptr.vmem [resolvable:$true] %s16
      %22 = dma.hbm_to_vmem [thread:$0]  %s15, 256, %s17, [#allocation3], 128, 128, 8
    $region5: #{tpu_custom_call.1} parent=1 // pred_fallthru
      _
    // Predicated region
    $region6: #{tpu_custom_call.1} parent=1 // pred_check
      _
    $region7: #{tpu_custom_call.1} parent=1 // pred_check_branch
      %24 = sbr.rel (0) target = $region9
    $region8: #{tpu_custom_call.1} parent=1 // pred_region
      %26 = vsyncadd [#allocation6], 0
      %s27 = sshll.u32 %s1, 4
      %s28 = int_to_ptr.hbm [resolvable:$true] %s27
      %s29 = sshll.u32 [#allocation5], 4
      %s30 = int_to_ptr.vmem [resolvable:$true] %s29
      %35 = dma.hbm_to_vmem [thread:$0]  %s28, 9344, %s30, [#allocation6], 128, 128, 8
    $region9: #{tpu_custom_call.1} parent=1 // pred_fallthru
      _
    // Predicated region
    $region10: #{tpu_custom_call.1} parent=1 // pred_check
      _
    $region11: #{tpu_custom_call.1} parent=1 // pred_check_branch
      %37 = sbr.rel (0) target = $region13
    $region12: #{tpu_custom_call.1} parent=1 // pred_region
      %39 = dma.done [#allocation3], 256
    $region13: #{tpu_custom_call.1} parent=1 // pred_fallthru
      _
    // Predicated region
    $region14: #{tpu_custom_call.1} parent=1 // pred_check
      _
    $region15: #{tpu_custom_call.1} parent=1 // pred_check_branch
      %41 = sbr.rel (0) target = $region17
    $region16: #{tpu_custom_call.1} parent=1 // pred_region
      %43 = dma.done [#allocation6], 9344
    $region17: #{tpu_custom_call.1} parent=1 // pred_fallthru
      _
    %v44 = vld [vmem:[#allocation5 + $0x220] sm:$0x1]
    %v45 = vld [vmem:[#allocation2] sm:$0xff]
    %v46 = vld [vmem:[#allocation2 + $0x8] sm:$0xff]
    %v47 = vperm.slane %v44, 0
    %v48 = vadd.f32 %v45, %v47
    %v49 = vadd.f32 %v46, %v47
    %v50 = vld [vmem:[#allocation5] sm:$0xff]
    %v51 = vld [vmem:[#allocation5 + $0x8] sm:$0xff]
    %v52 = vld [vmem:[#allocation5 + $0x10] sm:$0xff]
    %v53 = vld [vmem:[#allocation5 + $0x18] sm:$0xff]
    %v54 = vld [vmem:[#allocation5 + $0x80] sm:$0x1]
    %v55 = vperm.slane %v54, 0
    %vm56 = vcmask 261120
    %v58 = vsel %vm56, %v49, 0
    %60 = vmatpush.msra.mxu0 0.0
    %61 = vmatpush.msra.mxu0 0.0
    %62 = vmatpush.msra.mxu0 0.0
    %63 = vmatpush.msra.mxu0 0.0
    %64 = vmatpush.msra.mxu0 0.0
    %65 = vmatpush.msra.mxu0 0.0
    %66 = vmatpush.msra.mxu0 0.0
    %67 = vmatpush.msra.mxu0 0.0
    %68 = vmatpush.msra.mxu0 0.0
    %69 = vmatpush.msra.mxu0 0.0
    %70 = vmatpush.msra.mxu0 0.0
    %71 = vmatpush.msra.mxu0 0.0
    %72 = vmatpush.msra.mxu0 %v53
    %73 = vmatpush.msra.mxu0 %v52
    %74 = vmatpush.msra.mxu0 %v51
    %75 = vmatpush.msra.mxu0 %v50
    %76 = vmatmul.f32.gmra.mxu0 %v58
    %v77 = vpop.f32.mrf.mxu0
    %v78 = vadd.f32 %v55, %v77
    %79 = vdwg.mxu0
    %v80 = vadd.f32 %v48, %v78
    %v81 = vld [vmem:[#allocation5 + $0x81] sm:$0x1]
    %v82 = vld [vmem:[#allocation5 + $0x82] sm:$0x1]
    %v83 = vsel %vm56, %v80, 0.0
    %84 = vadd.xlane.f32.xlu0 %v83
    %v85 = vpop.xlane.xlu0 %84
    %v86 = vmul.f32 %v80, %v80
    %v87 = vsel %vm56, %v86, 0.0
    %88 = vadd.xlane.f32.xlu0 %v87
    %v89 = vpop.xlane.xlu0 %88
    %v90 = vmul.f32 %v85, 0.03125
    %v91 = vmul.f32 %v89, 0.03125
    %v92 = vmul.f32 %v90, %v90
    %v93 = vsub.f32 %v91, %v92
    %v94 = vsub.f32 %v80, %v90
    %v95 = vadd.f32 %v93, 1e-05
    %v96 = vrsqrt.pop %v95
    %v97 = vmul.f32 %v96, %v95
    %v98 = vmul.f32 %v97, %v96
    %v99 = vmul.f32 0.5, %v98
    %v100 = vsub.f32 1.5, %v99
    %v101 = vmul.f32 %v96, %v100
    %vm102 = vweird.f32 %v95
    %vm103 = vweird.f32 %v96
    %vm104 = vmor %vm102, %vm103
    %v105 = vsel %vm104, %v96, %v101
    %v106 = vmul.f32 %v94, %v105
    %v107 = vperm.slane %v81, 0
    %v108 = vmul.f32 %v106, %v107
    %v109 = vperm.slane %v82, 0
    %v110 = vadd.f32 %v108, %v109
    %v111 = vld [vmem:[#allocation5 + $0x20] sm:$0xff]
    %v112 = vld [vmem:[#allocation5 + $0x28] sm:$0xff]
    %v113 = vld [vmem:[#allocation5 + $0x30] sm:$0xff]
    %v114 = vld [vmem:[#allocation5 + $0x38] sm:$0xff]
    %v115 = vld [vmem:[#allocation5 + $0x85] sm:$0x1]
    %v116 = vperm.slane %v115, 0
    %v118 = vsel %vm56, %v110, 0
    %120 = vmatpush.msra.mxu0 0.0
    %121 = vmatpush.msra.mxu0 0.0
    %122 = vmatpush.msra.mxu0 0.0
    %123 = vmatpush.msra.mxu0 0.0
    %124 = vmatpush.msra.mxu0 0.0
    %125 = vmatpush.msra.mxu0 0.0
    %126 = vmatpush.msra.mxu0 0.0
    %127 = vmatpush.msra.mxu0 0.0
    %128 = vmatpush.msra.mxu0 0.0
    %129 = vmatpush.msra.mxu0 0.0
    %130 = vmatpush.msra.mxu0 0.0
    %131 = vmatpush.msra.mxu0 0.0
    %132 = vmatpush.msra.mxu0 %v114
    %133 = vmatpush.msra.mxu0 %v113
    %134 = vmatpush.msra.mxu0 %v112
    %135 = vmatpush.msra.mxu0 %v111
    %136 = vmatmul.f32.gmra.mxu0 %v118
    %v137 = vpop.f32.mrf.mxu0
    %v138 = vadd.f32 %v116, %v137
    %139 = vdwg.mxu0
    %v140 = vmul.f32 %v138, %v138
    %v141 = vmul.f32 %v138, %v140
    %v142 = vmul.f32 %v141, 0.044715
    %v143 = vadd.f32 %v138, %v142
    %v144 = vmul.f32 %v143, 0.7978846
    %v145 = vtanh.pop %v144
    %v146 = vadd.f32 %v145, 1.0
    %v147 = vmul.f32 %v146, 0.5
    %v148 = vmul.f32 %v138, %v147
    %v149 = vld [vmem:[#allocation5 + $0x40] sm:$0xff]
    %v150 = vld [vmem:[#allocation5 + $0x48] sm:$0xff]
    %v151 = vld [vmem:[#allocation5 + $0x50] sm:$0xff]
    %v152 = vld [vmem:[#allocation5 + $0x58] sm:$0xff]
    %v153 = vld [vmem:[#allocation5 + $0x60] sm:$0xff]
    %v154 = vld [vmem:[#allocation5 + $0x68] sm:$0xff]
    %v155 = vld [vmem:[#allocation5 + $0x70] sm:$0xff]
    %v156 = vld [vmem:[#allocation5 + $0x78] sm:$0xff]
    %v157 = vld [vmem:[#allocation5 + $0x86] sm:$0x1]
    %v158 = vperm.slane %v157, 0
    %vm159 = vcmask 523264
    %v161 = vsel %vm159, %v148, 0
    %163 = vmatpush.msra.mxu0 0.0
    %164 = vmatpush.msra.mxu0 0.0
    %165 = vmatpush.msra.mxu0 0.0
    %166 = vmatpush.msra.mxu0 0.0
    %167 = vmatpush.msra.mxu0 0.0
    %168 = vmatpush.msra.mxu0 0.0
    %169 = vmatpush.msra.mxu0 0.0
    %170 = vmatpush.msra.mxu0 0.0
    %171 = vmatpush.msra.mxu0 %v156
    %172 = vmatpush.msra.mxu0 %v155
    %173 = vmatpush.msra.mxu0 %v154
    %174 = vmatpush.msra.mxu0 %v153
    %175 = vmatpush.msra.mxu0 %v152
    %176 = vmatpush.msra.mxu0 %v151
    %177 = vmatpush.msra.mxu0 %v150
    %178 = vmatpush.msra.mxu0 %v149
    %179 = vmatmul.f32.gmra.mxu0 %v161
    %v180 = vpop.f32.mrf.mxu0
    %v181 = vadd.f32 %v158, %v180
    %182 = vdwg.mxu0
    %v183 = vadd.f32 %v110, %v181
    %v184 = vld [vmem:[#allocation5 + $0x83] sm:$0x1]
    %v185 = vld [vmem:[#allocation5 + $0x84] sm:$0x1]
    %v186 = vsel %vm56, %v183, 0.0
    %187 = vadd.xlane.f32.xlu0 %v186
    %v188 = vpop.xlane.xlu0 %187
    %v189 = vmul.f32 %v183, %v183
    %v190 = vsel %vm56, %v189, 0.0
    %191 = vadd.xlane.f32.xlu0 %v190
    %v192 = vpop.xlane.xlu0 %191
    %v193 = vmul.f32 %v188, 0.03125
    %v194 = vmul.f32 %v192, 0.03125
    %v195 = vmul.f32 %v193, %v193
    %v196 = vsub.f32 %v194, %v195
    %v197 = vsub.f32 %v183, %v193
    %v198 = vadd.f32 %v196, 1e-05
    %v199 = vrsqrt.pop %v198
    %v200 = vmul.f32 %v199, %v198
    %v201 = vmul.f32 %v200, %v199
    %v202 = vmul.f32 0.5, %v201
    %v203 = vsub.f32 1.5, %v202
    %v204 = vmul.f32 %v199, %v203
    %vm205 = vweird.f32 %v198
    %vm206 = vweird.f32 %v199
    %vm207 = vmor %vm205, %vm206
    %v208 = vsel %vm207, %v199, %v204
    %v209 = vmul.f32 %v197, %v208
    %v210 = vperm.slane %v184, 0
    %v211 = vmul.f32 %v209, %v210
    %v212 = vperm.slane %v185, 0
    %v213 = vadd.f32 %v211, %v212
    %v214 = vld [vmem:[#allocation5 + $0x88] sm:$0xff]
    %v215 = vld [vmem:[#allocation5 + $0x90] sm:$0xff]
    %v216 = vld [vmem:[#allocation5 + $0x98] sm:$0xff]
    %v217 = vld [vmem:[#allocation5 + $0xa0] sm:$0xff]
    %v218 = vld [vmem:[#allocation5 + $0x108] sm:$0x1]
    %v219 = vperm.slane %v218, 0
    %v221 = vsel %vm56, %v213, 0
    %223 = vmatpush.msra.mxu0 0.0
    %224 = vmatpush.msra.mxu0 0.0
    %225 = vmatpush.msra.mxu0 0.0
    %226 = vmatpush.msra.mxu0 0.0
    %227 = vmatpush.msra.mxu0 0.0
    %228 = vmatpush.msra.mxu0 0.0
    %229 = vmatpush.msra.mxu0 0.0
    %230 = vmatpush.msra.mxu0 0.0
    %231 = vmatpush.msra.mxu0 0.0
    %232 = vmatpush.msra.mxu0 0.0
    %233 = vmatpush.msra.mxu0 0.0
    %234 = vmatpush.msra.mxu0 0.0
    %235 = vmatpush.msra.mxu0 %v217
    %236 = vmatpush.msra.mxu0 %v216
    %237 = vmatpush.msra.mxu0 %v215
    %238 = vmatpush.msra.mxu0 %v214
    %239 = vmatmul.f32.gmra.mxu0 %v221
    %v240 = vpop.f32.mrf.mxu0
    %v241 = vadd.f32 %v219, %v240
    %242 = vdwg.mxu0
    %v243 = vadd.f32 %v49, %v241
    %v244 = vld [vmem:[#allocation5 + $0x109] sm:$0x1]
    %v245 = vld [vmem:[#allocation5 + $0x10a] sm:$0x1]
    %v246 = vsel %vm56, %v243, 0.0
    %247 = vadd.xlane.f32.xlu0 %v246
    %v248 = vpop.xlane.xlu0 %247
    %v249 = vmul.f32 %v243, %v243
    %v250 = vsel %vm56, %v249, 0.0
    %251 = vadd.xlane.f32.xlu0 %v250
    %v252 = vpop.xlane.xlu0 %251
    %v253 = vmul.f32 %v248, 0.03125
    %v254 = vmul.f32 %v252, 0.03125
    %v255 = vmul.f32 %v253, %v253
    %v256 = vsub.f32 %v254, %v255
    %v257 = vsub.f32 %v243, %v253
    %v258 = vadd.f32 %v256, 1e-05
    %v259 = vrsqrt.pop %v258
    %v260 = vmul.f32 %v259, %v258
    %v261 = vmul.f32 %v260, %v259
    %v262 = vmul.f32 0.5, %v261
    %v263 = vsub.f32 1.5, %v262
    %v264 = vmul.f32 %v259, %v263
    %vm265 = vweird.f32 %v258
    %vm266 = vweird.f32 %v259
    %vm267 = vmor %vm265, %vm266
    %v268 = vsel %vm267, %v259, %v264
    %v269 = vmul.f32 %v257, %v268
    %v270 = vperm.slane %v244, 0
    %v271 = vmul.f32 %v269, %v270
    %v272 = vperm.slane %v245, 0
    %v273 = vadd.f32 %v271, %v272
    %v274 = vld [vmem:[#allocation5 + $0xa8] sm:$0xff]
    %v275 = vld [vmem:[#allocation5 + $0xb0] sm:$0xff]
    %v276 = vld [vmem:[#allocation5 + $0xb8] sm:$0xff]
    %v277 = vld [vmem:[#allocation5 + $0xc0] sm:$0xff]
    %v278 = vld [vmem:[#allocation5 + $0x10d] sm:$0x1]
    %v279 = vperm.slane %v278, 0
    %v281 = vsel %vm56, %v273, 0
    %283 = vmatpush.msra.mxu0 0.0
    %284 = vmatpush.msra.mxu0 0.0
    %285 = vmatpush.msra.mxu0 0.0
    %286 = vmatpush.msra.mxu0 0.0
    %287 = vmatpush.msra.mxu0 0.0
    %288 = vmatpush.msra.mxu0 0.0
    %289 = vmatpush.msra.mxu0 0.0
    %290 = vmatpush.msra.mxu0 0.0
    %291 = vmatpush.msra.mxu0 0.0
    %292 = vmatpush.msra.mxu0 0.0
    %293 = vmatpush.msra.mxu0 0.0
    %294 = vmatpush.msra.mxu0 0.0
    %295 = vmatpush.msra.mxu0 %v277
    %296 = vmatpush.msra.mxu0 %v276
    %297 = vmatpush.msra.mxu0 %v275
    %298 = vmatpush.msra.mxu0 %v274
    %299 = vmatmul.f32.gmra.mxu0 %v281
    %v300 = vpop.f32.mrf.mxu0
    %v301 = vadd.f32 %v279, %v300
    %302 = vdwg.mxu0
    %v303 = vmul.f32 %v301, %v301
    %v304 = vmul.f32 %v301, %v303
    %v305 = vmul.f32 %v304, 0.044715
    %v306 = vadd.f32 %v301, %v305
    %v307 = vmul.f32 %v306, 0.7978846
    %v308 = vtanh.pop %v307
    %v309 = vadd.f32 %v308, 1.0
    %v310 = vmul.f32 %v309, 0.5
    %v311 = vmul.f32 %v301, %v310
    %v312 = vld [vmem:[#allocation5 + $0xc8] sm:$0xff]
    %v313 = vld [vmem:[#allocation5 + $0xd0] sm:$0xff]
    %v314 = vld [vmem:[#allocation5 + $0xd8] sm:$0xff]
    %v315 = vld [vmem:[#allocation5 + $0xe0] sm:$0xff]
    %v316 = vld [vmem:[#allocation5 + $0xe8] sm:$0xff]
    %v317 = vld [vmem:[#allocation5 + $0xf0] sm:$0xff]
    %v318 = vld [vmem:[#allocation5 + $0xf8] sm:$0xff]
    %v319 = vld [vmem:[#allocation5 + $0x100] sm:$0xff]
    %v320 = vld [vmem:[#allocation5 + $0x10e] sm:$0x1]
    %v321 = vperm.slane %v320, 0
    %v323 = vsel %vm159, %v311, 0
    %325 = vmatpush.msra.mxu0 0.0
    %326 = vmatpush.msra.mxu0 0.0
    %327 = vmatpush.msra.mxu0 0.0
    %328 = vmatpush.msra.mxu0 0.0
    %329 = vmatpush.msra.mxu0 0.0
    %330 = vmatpush.msra.mxu0 0.0
    %331 = vmatpush.msra.mxu0 0.0
    %332 = vmatpush.msra.mxu0 0.0
    %333 = vmatpush.msra.mxu0 %v319
    %334 = vmatpush.msra.mxu0 %v318
    %335 = vmatpush.msra.mxu0 %v317
    %336 = vmatpush.msra.mxu0 %v316
    %337 = vmatpush.msra.mxu0 %v315
    %338 = vmatpush.msra.mxu0 %v314
    %339 = vmatpush.msra.mxu0 %v313
    %340 = vmatpush.msra.mxu0 %v312
    %341 = vmatmul.f32.gmra.mxu0 %v323
    %v342 = vpop.f32.mrf.mxu0
    %v343 = vadd.f32 %v321, %v342
    %344 = vdwg.mxu0
    %v345 = vadd.f32 %v273, %v343
    %v346 = vld [vmem:[#allocation5 + $0x10b] sm:$0x1]
    %v347 = vld [vmem:[#allocation5 + $0x10c] sm:$0x1]
    %v348 = vsel %vm56, %v345, 0.0
    %349 = vadd.xlane.f32.xlu0 %v348
    %v350 = vpop.xlane.xlu0 %349
    %v351 = vmul.f32 %v345, %v345
    %v352 = vsel %vm56, %v351, 0.0
    %353 = vadd.xlane.f32.xlu0 %v352
    %v354 = vpop.xlane.xlu0 %353
    %v355 = vmul.f32 %v350, 0.03125
    %v356 = vmul.f32 %v354, 0.03125
    %v357 = vmul.f32 %v355, %v355
    %v358 = vsub.f32 %v356, %v357
    %v359 = vsub.f32 %v345, %v355
    %v360 = vadd.f32 %v358, 1e-05
    %v361 = vrsqrt.pop %v360
    %v362 = vmul.f32 %v361, %v360
    %v363 = vmul.f32 %v362, %v361
    %v364 = vmul.f32 0.5, %v363
    %v365 = vsub.f32 1.5, %v364
    %v366 = vmul.f32 %v361, %v365
    %vm367 = vweird.f32 %v360
    %vm368 = vweird.f32 %v361
    %vm369 = vmor %vm367, %vm368
    %v370 = vsel %vm369, %v361, %v366
    %v371 = vmul.f32 %v359, %v370
    %v372 = vperm.slane %v346, 0
    %v373 = vmul.f32 %v371, %v372
    %v374 = vperm.slane %v347, 0
    %v375 = vadd.f32 %v373, %v374
    %v376 = vld [vmem:[#allocation5 + $0x110] sm:$0xff]
    %v377 = vld [vmem:[#allocation5 + $0x118] sm:$0xff]
    %v378 = vld [vmem:[#allocation5 + $0x120] sm:$0xff]
    %v379 = vld [vmem:[#allocation5 + $0x128] sm:$0xff]
    %v380 = vld [vmem:[#allocation5 + $0x190] sm:$0x1]
    %v381 = vperm.slane %v380, 0
    %v383 = vsel %vm56, %v375, 0
    %385 = vmatpush.msra.mxu0 0.0
    %386 = vmatpush.msra.mxu0 0.0
    %387 = vmatpush.msra.mxu0 0.0
    %388 = vmatpush.msra.mxu0 0.0
    %389 = vmatpush.msra.mxu0 0.0
    %390 = vmatpush.msra.mxu0 0.0
    %391 = vmatpush.msra.mxu0 0.0
    %392 = vmatpush.msra.mxu0 0.0
    %393 = vmatpush.msra.mxu0 0.0
    %394 = vmatpush.msra.mxu0 0.0
    %395 = vmatpush.msra.mxu0 0.0
    %396 = vmatpush.msra.mxu0 0.0
    %397 = vmatpush.msra.mxu0 %v379
    %398 = vmatpush.msra.mxu0 %v378
    %399 = vmatpush.msra.mxu0 %v377
    %400 = vmatpush.msra.mxu0 %v376
    %401 = vmatmul.f32.gmra.mxu0 %v383
    %v402 = vpop.f32.mrf.mxu0
    %v403 = vadd.f32 %v381, %v402
    %404 = vdwg.mxu0
    %v405 = vadd.f32 %v213, %v403
    %v406 = vld [vmem:[#allocation5 + $0x191] sm:$0x1]
    %v407 = vld [vmem:[#allocation5 + $0x192] sm:$0x1]
    %v408 = vsel %vm56, %v405, 0.0
    %409 = vadd.xlane.f32.xlu0 %v408
    %v410 = vpop.xlane.xlu0 %409
    %v411 = vmul.f32 %v405, %v405
    %v412 = vsel %vm56, %v411, 0.0
    %413 = vadd.xlane.f32.xlu0 %v412
    %v414 = vpop.xlane.xlu0 %413
    %v415 = vmul.f32 %v410, 0.03125
    %v416 = vmul.f32 %v414, 0.03125
    %v417 = vmul.f32 %v415, %v415
    %v418 = vsub.f32 %v416, %v417
    %v419 = vsub.f32 %v405, %v415
    %v420 = vadd.f32 %v418, 1e-05
    %v421 = vrsqrt.pop %v420
    %v422 = vmul.f32 %v421, %v420
    %v423 = vmul.f32 %v422, %v421
    %v424 = vmul.f32 0.5, %v423
    %v425 = vsub.f32 1.5, %v424
    %v426 = vmul.f32 %v421, %v425
    %vm427 = vweird.f32 %v420
    %vm428 = vweird.f32 %v421
    %vm429 = vmor %vm427, %vm428
    %v430 = vsel %vm429, %v421, %v426
    %v431 = vmul.f32 %v419, %v430
    %v432 = vperm.slane %v406, 0
    %v433 = vmul.f32 %v431, %v432
    %v434 = vperm.slane %v407, 0
    %v435 = vadd.f32 %v433, %v434
    %v436 = vld [vmem:[#allocation5 + $0x130] sm:$0xff]
    %v437 = vld [vmem:[#allocation5 + $0x138] sm:$0xff]
    %v438 = vld [vmem:[#allocation5 + $0x140] sm:$0xff]
    %v439 = vld [vmem:[#allocation5 + $0x148] sm:$0xff]
    %v440 = vld [vmem:[#allocation5 + $0x195] sm:$0x1]
    %v441 = vperm.slane %v440, 0
    %v443 = vsel %vm56, %v435, 0
    %445 = vmatpush.msra.mxu0 0.0
    %446 = vmatpush.msra.mxu0 0.0
    %447 = vmatpush.msra.mxu0 0.0
    %448 = vmatpush.msra.mxu0 0.0
    %449 = vmatpush.msra.mxu0 0.0
    %450 = vmatpush.msra.mxu0 0.0
    %451 = vmatpush.msra.mxu0 0.0
    %452 = vmatpush.msra.mxu0 0.0
    %453 = vmatpush.msra.mxu0 0.0
    %454 = vmatpush.msra.mxu0 0.0
    %455 = vmatpush.msra.mxu0 0.0
    %456 = vmatpush.msra.mxu0 0.0
    %457 = vmatpush.msra.mxu0 %v439
    %458 = vmatpush.msra.mxu0 %v438
    %459 = vmatpush.msra.mxu0 %v437
    %460 = vmatpush.msra.mxu0 %v436
    %461 = vmatmul.f32.gmra.mxu0 %v443
    %v462 = vpop.f32.mrf.mxu0
    %v463 = vadd.f32 %v441, %v462
    %464 = vdwg.mxu0
    %v465 = vmul.f32 %v463, %v463
    %v466 = vmul.f32 %v463, %v465
    %v467 = vmul.f32 %v466, 0.044715
    %v468 = vadd.f32 %v463, %v467
    %v469 = vmul.f32 %v468, 0.7978846
    %v470 = vtanh.pop %v469
    %v471 = vadd.f32 %v470, 1.0
    %v472 = vmul.f32 %v471, 0.5
    %v473 = vmul.f32 %v463, %v472
    %v474 = vld [vmem:[#allocation5 + $0x150] sm:$0xff]
    %v475 = vld [vmem:[#allocation5 + $0x158] sm:$0xff]
    %v476 = vld [vmem:[#allocation5 + $0x160] sm:$0xff]
    %v477 = vld [vmem:[#allocation5 + $0x168] sm:$0xff]
    %v478 = vld [vmem:[#allocation5 + $0x170] sm:$0xff]
    %v479 = vld [vmem:[#allocation5 + $0x178] sm:$0xff]
    %v480 = vld [vmem:[#allocation5 + $0x180] sm:$0xff]
    %v481 = vld [vmem:[#allocation5 + $0x188] sm:$0xff]
    %v482 = vld [vmem:[#allocation5 + $0x196] sm:$0x1]
    %v483 = vperm.slane %v482, 0
    %v485 = vsel %vm159, %v473, 0
    %487 = vmatpush.msra.mxu0 0.0
    %488 = vmatpush.msra.mxu0 0.0
    %489 = vmatpush.msra.mxu0 0.0
    %490 = vmatpush.msra.mxu0 0.0
    %491 = vmatpush.msra.mxu0 0.0
    %492 = vmatpush.msra.mxu0 0.0
    %493 = vmatpush.msra.mxu0 0.0
    %494 = vmatpush.msra.mxu0 0.0
    %495 = vmatpush.msra.mxu0 %v481
    %496 = vmatpush.msra.mxu0 %v480
    %497 = vmatpush.msra.mxu0 %v479
    %498 = vmatpush.msra.mxu0 %v478
    %499 = vmatpush.msra.mxu0 %v477
    %500 = vmatpush.msra.mxu0 %v476
    %501 = vmatpush.msra.mxu0 %v475
    %502 = vmatpush.msra.mxu0 %v474
    %503 = vmatmul.f32.gmra.mxu0 %v485
    %v504 = vpop.f32.mrf.mxu0
    %v505 = vadd.f32 %v483, %v504
    %506 = vdwg.mxu0
    %v507 = vadd.f32 %v435, %v505
    %v508 = vld [vmem:[#allocation5 + $0x193] sm:$0x1]
    %v509 = vld [vmem:[#allocation5 + $0x194] sm:$0x1]
    %v510 = vsel %vm56, %v507, 0.0
    %511 = vadd.xlane.f32.xlu0 %v510
    %v512 = vpop.xlane.xlu0 %511
    %v513 = vmul.f32 %v507, %v507
    %v514 = vsel %vm56, %v513, 0.0
    %515 = vadd.xlane.f32.xlu0 %v514
    %v516 = vpop.xlane.xlu0 %515
    %v517 = vmul.f32 %v512, 0.03125
    %v518 = vmul.f32 %v516, 0.03125
    %v519 = vmul.f32 %v517, %v517
    %v520 = vsub.f32 %v518, %v519
    %v521 = vsub.f32 %v507, %v517
    %v522 = vadd.f32 %v520, 1e-05
    %v523 = vrsqrt.pop %v522
    %v524 = vmul.f32 %v523, %v522
    %v525 = vmul.f32 %v524, %v523
    %v526 = vmul.f32 0.5, %v525
    %v527 = vsub.f32 1.5, %v526
    %v528 = vmul.f32 %v523, %v527
    %vm529 = vweird.f32 %v522
    %vm530 = vweird.f32 %v523
    %vm531 = vmor %vm529, %vm530
    %v532 = vsel %vm531, %v523, %v528
    %v533 = vmul.f32 %v521, %v532
    %v534 = vperm.slane %v508, 0
    %v535 = vmul.f32 %v533, %v534
    %v536 = vperm.slane %v509, 0
    %v537 = vadd.f32 %v535, %v536
    %v538 = vld [vmem:[#allocation5 + $0x221] sm:$0x1]
    %v539 = vld [vmem:[#allocation5 + $0x222] sm:$0x1]
    %v540 = vsel %vm56, %v537, 0.0
    %541 = vadd.xlane.f32.xlu0 %v540
    %v542 = vpop.xlane.xlu0 %541
    %v543 = vmul.f32 %v537, %v537
    %v544 = vsel %vm56, %v543, 0.0
    %545 = vadd.xlane.f32.xlu0 %v544
    %v546 = vpop.xlane.xlu0 %545
    %v547 = vmul.f32 %v542, 0.03125
    %v548 = vmul.f32 %v546, 0.03125
    %v549 = vmul.f32 %v547, %v547
    %v550 = vsub.f32 %v548, %v549
    %v551 = vsub.f32 %v537, %v547
    %v552 = vadd.f32 %v550, 1e-05
    %v553 = vrsqrt.pop %v552
    %v554 = vmul.f32 %v553, %v552
    %v555 = vmul.f32 %v554, %v553
    %v556 = vmul.f32 0.5, %v555
    %v557 = vsub.f32 1.5, %v556
    %v558 = vmul.f32 %v553, %v557
    %vm559 = vweird.f32 %v552
    %vm560 = vweird.f32 %v553
    %vm561 = vmor %vm559, %vm560
    %v562 = vsel %vm561, %v553, %v558
    %v563 = vmul.f32 %v551, %v562
    %v564 = vperm.slane %v538, 0
    %v565 = vmul.f32 %v563, %v564
    %v566 = vperm.slane %v539, 0
    %v567 = vadd.f32 %v565, %v566
    %v568 = vld [vmem:[#allocation5 + $0x228] sm:$0xff]
    %v569 = vld [vmem:[#allocation5 + $0x230] sm:$0xff]
    %v570 = vld [vmem:[#allocation5 + $0x238] sm:$0xff]
    %v571 = vld [vmem:[#allocation5 + $0x240] sm:$0xff]
    %v572 = vld [vmem:[#allocation5 + $0x223] sm:$0x1]
    %v573 = vperm.slane %v572, 0
    %v575 = vsel %vm56, %v567, 0
    %577 = vmatpush.msra.mxu0 0.0
    %578 = vmatpush.msra.mxu0 0.0
    %579 = vmatpush.msra.mxu0 0.0
    %580 = vmatpush.msra.mxu0 0.0
    %581 = vmatpush.msra.mxu0 0.0
    %582 = vmatpush.msra.mxu0 0.0
    %583 = vmatpush.msra.mxu0 0.0
    %584 = vmatpush.msra.mxu0 0.0
    %585 = vmatpush.msra.mxu0 0.0
    %586 = vmatpush.msra.mxu0 0.0
    %587 = vmatpush.msra.mxu0 0.0
    %588 = vmatpush.msra.mxu0 0.0
    %589 = vmatpush.msra.mxu0 %v571
    %590 = vmatpush.msra.mxu0 %v570
    %591 = vmatpush.msra.mxu0 %v569
    %592 = vmatpush.msra.mxu0 %v568
    %593 = vmatmul.f32.gmra.mxu0 %v575
    %v594 = vpop.f32.mrf.mxu0
    %v595 = vadd.f32 %v573, %v594
    %596 = vdwg.mxu0
    %vm597 = vcmask 130048
    %598 = vst.msk [vmem:[#allocation7] sm:$0xff] %vm597, %v595
    // Predicated region
    $region18: #{tpu_custom_call.1} parent=1 // pred_check
      _
    $region19: #{tpu_custom_call.1} parent=1 // pred_check_branch
      %600 = sbr.rel (0) target = $region21
    $region20: #{tpu_custom_call.1} parent=1 // pred_region
      %602 = vsyncadd [#allocation4], 0
      %s604 = sshll.u32 [#allocation7], 4
      %s605 = int_to_ptr.vmem [resolvable:$true] %s604
      %s606 = sshll.u32 %s2, 4
      %s607 = int_to_ptr.hbm [resolvable:$true] %s606
      %609 = dma.vmem_to_hbm [thread:$0]  %s605, 128, %s607, [#allocation4]
    $region21: #{tpu_custom_call.1} parent=1 // pred_fallthru
      _
    // Predicated region
    $region22: #{tpu_custom_call.1} parent=1 // pred_check
      _
    $region23: #{tpu_custom_call.1} parent=1 // pred_check_branch
      %611 = sbr.rel (0) target = $region25
    $region24: #{tpu_custom_call.1} parent=1 // pred_region
      %613 = dma.done [#allocation4], 128
    $region25: #{tpu_custom_call.1} parent=1 // pred_fallthru
      _
    %614 = vsyncpa [#allocation3], 1
    %615 = vsyncpa [#allocation6], 1
    %616 = vsyncpa [#allocation4], 1

</llo_original>
